<compile_context>
chip_gen: v5e
topology: v5e:2x2
jax: 0.10.0
libtpu: 0.0.40
codegen_flags: <defaults>
</compile_context>

<pallas_src>
import functools

import jax
import jax.numpy as jnp
from jax.experimental import pallas as pl
from jax.experimental.pallas import tpu as pltpu

LANE = 128


def _tpu_defaults():
    """Per-generation row tile + VMEM budget (safe fallbacks if query fails)."""
    kind = ""
    try:
        kind = jax.devices()[0].device_kind.lower()
    except Exception:
        pass
    tm = 256                          # v6e / v7x: 256-wide MXU
    vmem = 48 * 1024 * 1024           # safe under v7x's 64 MiB physical VMEM
    if ("v5e" in kind) or ("v5 lite" in kind) or ("v5lite" in kind):
        tm = 128                      # v5e MXU is 128-wide; 256 buys nothing
        vmem = 96 * 1024 * 1024       # 128 MiB physical
    elif ("v6" in kind) or ("v5" in kind):
        vmem = 96 * 1024 * 1024       # 128 MiB physical
    return tm, vmem


TM_DEFAULT, VMEM_LIMIT = _tpu_defaults()


def _round_up(n, m):
    return ((n + m - 1) // m) * m


# ----------------------------------------------------------------------------
# Pallas kernel: (TM,K)@(K,TN) on the MXU + fused bias/BN affine + activation
# ----------------------------------------------------------------------------
def _gemm_bn_act_kernel(x_ref, w_ref, s_ref, b_ref, a_ref, o_ref, *, act):
    acc = jnp.dot(x_ref[...], w_ref[...], preferred_element_type=jnp.float32)
    acc = acc * s_ref[...] + b_ref[...]          # folded BN scale + (conv+BN) bias
    if act == "relu":
        acc = jnp.maximum(acc, 0.0)
    elif act == "prelu":
        acc = jnp.where(acc > 0, acc, a_ref[...] * acc)   # per-channel alpha
    elif act == "sigmoid":
        acc = jax.nn.sigmoid(acc)
    # else: identity
    o_ref[...] = acc.astype(o_ref.dtype)


# ----------------------------------------------------------------------------
# Channels-last core (preferred entry when chaining layers)
# ----------------------------------------------------------------------------
def _circ_conv_nhwc(x_nhwc, wm, scale, bias, alpha, *, cout, ks, act, tm):
    N, H, W, C = x_nhwc.shape
    p = ks // 2
    if ks == 1:
        pm = x_nhwc.reshape(N * H * W, C)        # 1x1 fast path: no im2col
    else:
        # circular padding (== torch padding_mode='circular'), then im2col taps
        xp = jnp.pad(x_nhwc, ((0, 0), (p, p), (p, p), (0, 0)), mode="wrap")
        taps = [xp[:, di:di + H, dj:dj + W, :]
                for di in range(ks) for dj in range(ks)]
        pm = jnp.stack(taps, axis=3).reshape(N * H * W, ks * ks * C)

    M, K = pm.shape
    Kp, Np = wm.shape                            # pre-padded weight matrix
    Mp = pl.cdiv(M, tm) * tm
    pm = jnp.pad(pm, ((0, Mp - M), (0, Kp - K))).astype(jnp.bfloat16)

    tn = 256 if (Np % 256 == 0 and tm >= 256) else LANE
    grid = (Mp // tm, Np // tn)

    out = pl.pallas_call(
        functools.partial(_gemm_bn_act_kernel, act=act),
        out_shape=jax.ShapeDtypeStruct((Mp, Np), jnp.float32),
        grid=grid,
        in_specs=[
            pl.BlockSpec((tm, Kp), lambda i, j: (i, 0)),
            pl.BlockSpec((Kp, tn), lambda i, j: (0, j)),
            pl.BlockSpec((1, tn), lambda i, j: (0, j)),
            pl.BlockSpec((1, tn), lambda i, j: (0, j)),
            pl.BlockSpec((1, tn), lambda i, j: (0, j)),
        ],
        out_specs=pl.BlockSpec((tm, tn), lambda i, j: (i, j)),
        compiler_params=pltpu.CompilerParams(
            dimension_semantics=("parallel", "parallel"),
            vmem_limit_bytes=VMEM_LIMIT),
    )(pm, wm, scale, bias, alpha)

    return out[:M, :cout].reshape(N, H, W, cout)


circ_conv_nhwc = jax.jit(_circ_conv_nhwc,
                         static_argnames=("cout", "ks", "act", "tm"))


@functools.partial(jax.jit, static_argnames=("cout", "ks", "act", "tm"))
def circ_conv_nchw(x_nchw, wm, scale, bias, alpha, *, cout, ks, act,
                   tm=TM_DEFAULT):
    """Module-facing wrapper: NCHW in -> NCHW out (one transpose each way)."""
    x_nhwc = jnp.transpose(x_nchw, (0, 2, 3, 1))
    y = _circ_conv_nhwc(x_nhwc, wm, scale, bias, alpha,
                        cout=cout, ks=ks, act=act, tm=tm)
    return jnp.transpose(y, (0, 3, 1, 2))


# ----------------------------------------------------------------------------
# Parameter construction + one-time GEMM-ready packing (outside the jit path)
# ----------------------------------------------------------------------------
def init_circconv_params(key, in_depth, out_depth, ks=3):
    k1, k2, k3, k4, k5, k6 = jax.random.split(key, 6)
    fan_in = in_depth * ks * ks
    bound = 1.0 / float(fan_in) ** 0.5
    w = jax.random.uniform(k1, (out_depth, in_depth, ks, ks), jnp.float32,
                           -bound, bound)
    b = jax.random.uniform(k2, (out_depth,), jnp.float32, -bound, bound)
    alpha = jnp.full((out_depth,), 0.25, jnp.float32)      # PReLU init
    gamma = 1.0 + 0.1 * jax.random.normal(k3, (out_depth,), jnp.float32)
    beta = 0.1 * jax.random.normal(k4, (out_depth,), jnp.float32)
    mean = 0.1 * jax.random.normal(k5, (out_depth,), jnp.float32)
    var = 1.0 + 0.5 * jnp.abs(jax.random.normal(k6, (out_depth,), jnp.float32))
    return {"w": w, "b": b, "alpha": alpha, "bn": (gamma, beta, mean, var)}


def prepare_gemm_params(params, *, BN, ks):
    """Pre-transpose / pre-pad weights and fold conv-bias + BN into scale/bias.

    Done once, outside the per-call jit path (no runtime weight relayout).
    """
    w = params["w"]
    cout, cin, kh, kw = w.shape
    K = kh * kw * cin
    wm = jnp.transpose(w, (2, 3, 1, 0)).reshape(K, cout)    # (kh,kw,cin) x cout
    if BN:
        gamma, beta, mean, var = params["bn"]
        s = gamma * jax.lax.rsqrt(var + 1e-5)
        scale = s
        bias = beta + (params["b"] - mean) * s
    else:
        scale = jnp.ones((cout,), jnp.float32)
        bias = params["b"]
    Kp = _round_up(K, LANE)
    Np = _round_up(cout, LANE)
    wm = jnp.pad(wm, ((0, Kp - K), (0, Np - cout))).astype(jnp.bfloat16)
    scale = jnp.pad(scale, (0, Np - cout), constant_values=1.0).reshape(1, Np)
    bias = jnp.pad(bias, (0, Np - cout)).reshape(1, Np)
    alpha = jnp.pad(params["alpha"], (0, Np - cout),
                    constant_values=0.25).reshape(1, Np)
    return {"w": wm, "scale": scale, "bias": bias, "alpha": alpha}


# ----------------------------------------------------------------------------
# Pure-JAX reference (mirrors CircConv.forward) for correctness checking
# ----------------------------------------------------------------------------
def ref_circ_conv(x_nchw, params, *, BN, AF, ks):
    p = ks // 2
    xp = jnp.pad(x_nchw, ((0, 0), (0, 0), (p, p), (p, p)), mode="wrap")
    out = jax.lax.conv_general_dilated(
        xp, params["w"], window_strides=(1, 1), padding="VALID",
        dimension_numbers=("NCHW", "OIHW", "NCHW"))
    out = out + params["b"][None, :, None, None]
    if BN:
        gamma, beta, mean, var = params["bn"]
        s = gamma * jax.lax.rsqrt(var + 1e-5)
        out = (out - mean[None, :, None, None]) * s[None, :, None, None] \
            + beta[None, :, None, None]
    if AF == "relu":
        out = jnp.maximum(out, 0.0)
    elif AF == "prelu":
        a = params["alpha"][None, :, None, None]
        out = jnp.where(out > 0, out, a * out)
    elif AF == "sigmoid":
        out = jax.nn.sigmoid(out)
    return out


if __name__ == "__main__":
    key = jax.random.PRNGKey(0)
    pkey, xkey = jax.random.split(key)

    in_depth, out_depth, ks = 4, 8, 3
    params = init_circconv_params(pkey, in_depth, out_depth, ks)

    # Small NCHW input consistent with the module.
    x = jax.random.normal(xkey, (2, in_depth, 16, 16), jnp.float32)

    # Exercise the module's configurations: default (PReLU, no BN),
    # BN + ReLU, and sigmoid.
    for BN, AF in ((False, "prelu"), (True, "relu"), (False, "sigmoid")):
        gp = prepare_gemm_params(params, BN=BN, ks=ks)
        out = circ_conv_nchw(x, gp["w"], gp["scale"], gp["bias"], gp["alpha"],
                             cout=out_depth, ks=ks, act=AF)
        out = jax.block_until_ready(out)
        assert out.shape == (2, out_depth, 16, 16), out.shape
        assert bool(jnp.all(jnp.isfinite(out)))
        ref = ref_circ_conv(x, params, BN=BN, AF=AF, ks=ks)
        max_err = float(jnp.max(jnp.abs(out - ref)))
        assert max_err < 5e-2, (BN, AF, max_err)   # bf16 GEMM vs f32 reference

    print("KERNEL_OK")
</pallas_src>

<mosaic_0001>
module attributes {stable_mosaic.version = 11 : i64} {
  func.func @_gemm_bn_act_kernel(%arg0: i32, %arg1: i32, %arg2: memref<256x128xbf16, #tpu.memory_space<vmem>>, %arg3: memref<128x128xbf16, #tpu.memory_space<vmem>>, %arg4: memref<1x128xf32, #tpu.memory_space<vmem>>, %arg5: memref<1x128xf32, #tpu.memory_space<vmem>>, %arg6: memref<1x128xf32, #tpu.memory_space<vmem>>, %arg7: memref<256x128xf32, #tpu.memory_space<vmem>>) attributes {dimension_semantics = [#tpu.dimension_semantics<parallel>, #tpu.dimension_semantics<parallel>], iteration_bounds = array<i64: 2, 1>, scalar_prefetch = 0 : i64, scratch_operands = 0 : i64, tpu.core_type = #tpu.core_type<tc>, window_params = [{transform_indices = @transform_0, window_bounds = array<i64: 256, 128>}, {transform_indices = @transform_1, window_bounds = array<i64: 128, 128>}, {transform_indices = @transform_2, window_bounds = array<i64: 1, 128>}, {transform_indices = @transform_3, window_bounds = array<i64: 1, 128>}, {transform_indices = @transform_4, window_bounds = array<i64: 1, 128>}, {transform_indices = @transform_5, window_bounds = array<i64: 256, 128>}]} {
    %c0 = arith.constant 0 : index
    %c0_0 = arith.constant 0 : index
    %0 = vector.load %arg2[%c0, %c0_0] : memref<256x128xbf16, #tpu.memory_space<vmem>>, vector<256x128xbf16>
    %c0_1 = arith.constant 0 : index
    %c0_2 = arith.constant 0 : index
    %1 = vector.load %arg3[%c0_1, %c0_2] : memref<128x128xbf16, #tpu.memory_space<vmem>>, vector<128x128xbf16>
    %cst = arith.constant dense<0.000000e+00> : vector<256x128xf32>
    %2 = tpu.matmul %0, %1, %cst {dimension_numbers = #tpu.dot_dimension_numbers<[1], [0], [0], [1], [0, 0, 1, 1], [], []>} : vector<256x128xbf16>, vector<128x128xbf16>, vector<256x128xf32> -> vector<256x128xf32>
    %c0_3 = arith.constant 0 : index
    %c0_4 = arith.constant 0 : index
    %3 = vector.load %arg4[%c0_3, %c0_4] : memref<1x128xf32, #tpu.memory_space<vmem>>, vector<1x128xf32>
    %4 = vector.broadcast %3 : vector<1x128xf32> to vector<256x128xf32>
    %5 = arith.mulf %2, %4 : vector<256x128xf32>
    %c0_5 = arith.constant 0 : index
    %c0_6 = arith.constant 0 : index
    %6 = vector.load %arg5[%c0_5, %c0_6] : memref<1x128xf32, #tpu.memory_space<vmem>>, vector<1x128xf32>
    %7 = vector.broadcast %6 : vector<1x128xf32> to vector<256x128xf32>
    %8 = arith.addf %5, %7 : vector<256x128xf32>
    %cst_7 = arith.constant 0.000000e+00 : f32
    %9 = vector.broadcast %cst_7 : f32 to vector<256x128xf32>
    %10 = arith.cmpf ogt, %8, %9 : vector<256x128xf32>
    %c0_8 = arith.constant 0 : index
    %c0_9 = arith.constant 0 : index
    %11 = vector.load %arg6[%c0_8, %c0_9] : memref<1x128xf32, #tpu.memory_space<vmem>>, vector<1x128xf32>
    %12 = vector.broadcast %11 : vector<1x128xf32> to vector<256x128xf32>
    %13 = arith.mulf %12, %8 : vector<256x128xf32>
    %14 = arith.select %10, %8, %13 : vector<256x128xi1>, vector<256x128xf32>
    %c0_10 = arith.constant 0 : index
    %c0_11 = arith.constant 0 : index
    %15 = vector.load %arg7[%c0_10, %c0_11] : memref<256x128xf32, #tpu.memory_space<vmem>>, vector<256x128xf32>
    tpu.vector_store %arg7[%c0_10, %c0_11], %14 {strides = array<i32>} : memref<256x128xf32, #tpu.memory_space<vmem>>, vector<256x128xf32>,
    return
  }
  func.func @transform_0(%arg0: i32, %arg1: i32) -> (i32, i32) {
    %c0_i32 = arith.constant 0 : i32
    %c0_i32_0 = arith.constant 0 : i32
    return %arg0, %c0_i32 : i32, i32
  }
  func.func @transform_1(%arg0: i32, %arg1: i32) -> (i32, i32) {
    %c0_i32 = arith.constant 0 : i32
    %c0_i32_0 = arith.constant 0 : i32
    return %c0_i32, %arg1 : i32, i32
  }
  func.func @transform_2(%arg0: i32, %arg1: i32) -> (i32, i32) {
    %c0_i32 = arith.constant 0 : i32
    %c0_i32_0 = arith.constant 0 : i32
    return %c0_i32, %arg1 : i32, i32
  }
  func.func @transform_3(%arg0: i32, %arg1: i32) -> (i32, i32) {
    %c0_i32 = arith.constant 0 : i32
    %c0_i32_0 = arith.constant 0 : i32
    return %c0_i32, %arg1 : i32, i32
  }
  func.func @transform_4(%arg0: i32, %arg1: i32) -> (i32, i32) {
    %c0_i32 = arith.constant 0 : i32
    %c0_i32_0 = arith.constant 0 : i32
    return %c0_i32, %arg1 : i32, i32
  }
  func.func @transform_5(%arg0: i32, %arg1: i32) -> (i32, i32) {
    %c0_i32 = arith.constant 0 : i32
    return %arg0, %arg1 : i32, i32
  }
}

</mosaic_0001>

<llo_original>
// kernel: circ_conv_nchw.1
$region0: #{circ_conv_nchw.1}
  #allocation0 [shape = 'u32[]', space=smem, size = 0x4, offset = 0x4, fixed_abs, tag = 'smem constant byte address 0x4 - core index']
  #allocation1 [shape = 'u32[72,128]{1,0:T(1,128)}', space=vmem, size = 0x9000, scoped, tag = 'internal scratch']
  %s0 = inlined_call_operand.vmem [shape: bf16[512,128], index: 0, kind: input, shape index: {}]
  %s1 = inlined_call_operand.vmem [shape: bf16[128,128], index: 1, kind: input, shape index: {}]
  %s2 = inlined_call_operand.vmem [shape: f32[1,128], index: 2, kind: input, shape index: {}]
  %s3 = inlined_call_operand.vmem [shape: f32[1,128], index: 3, kind: input, shape index: {}]
  %s4 = inlined_call_operand.vmem [shape: f32[1,128], index: 4, kind: input, shape index: {}]
  %s5 = inlined_call_operand.vmem [shape: f32[512,128], index: 5, kind: output, shape index: {}]
  %s6 = sld [smem:[#allocation0]]
  $region53: #{circ_conv_nchw.1} parent=0
    _
  %s8 = ssub.s32 1, %s6
  %s9 = scalar_select 0, %s8, %s6
  loop: start=0, step=1, limit=4
  $region2: #{circ_conv_nchw.1} parent=0 // loop_pre_header
    _
  $region3: #{circ_conv_nchw.1} parent=0 // loop_header
    %s11 = sphi 0, %s15
    %p12 = scmp.ge.s32.totalorder %s11, 4
    %s18 = sphi 0, %s30
    %s19 = sphi 0, %s26
    %s20 = sphi 0, %s18
    %s21 = sphi 0, %s19
    %s22 = sphi 0, %s20
    %s23 = sphi 0, %s21
    %s33 = sphi 0, %s35
    %s36 = sphi 0, %s33
    %s37 = sphi 0, %s36
    %s53 = sphi 0, %s37
    %s59 = sphi 0, %s61
    %s62 = sphi 0, %s59
    %s63 = sphi 0, %s62
    %s79 = sphi 0, %s63
    %s85 = sphi 0, %s87
    %s88 = sphi 0, %s85
    %s89 = sphi 0, %s88
    %s105 = sphi 0, %s89
    %s111 = sphi 0, %s113
    %s114 = sphi 0, %s111
    %s115 = sphi 0, %s114
    %s131 = sphi 0, %s115
    %s137 = sphi 0, %s139
    %s140 = sphi 0, %s137
    %s141 = sphi 0, %s140
    %s157 = sphi 0, %s141
    %s165 = sphi 0, %s167
    %s168 = sphi 0, %s165
    %s169 = sphi 0, %s168
    %s185 = sphi 0, %s169
  $region4: #{circ_conv_nchw.1} parent=0 // loop_header_branch
    %14 = sbr.rel (%p12) target = $region8
  $region5: #{circ_conv_nchw.1} parent=0 // loop_body
    %s16 = ssub.s32 %s11, 1
    %s17 = ssub.s32 %s11, 2
    %s24 = sadd.s32 1, %s19
    %p25 = scmp.ge.s32.totalorder %s24, 1
    %s26 = scalar_select %p25, 0, %s24
    %s27 = sadd.s32 1, %s18
    %s28 = scalar_select %p25, %s27, %s18
    %p29 = scmp.ge.s32.totalorder %s28, 2
    %s30 = scalar_select %p29, 0, %s28
    %s31 = ssub.s32 %s18, %s30
    %p32 = scmp.eq.s32.totalorder %s31, 0
    %s34 = sadd.s32 %s33, 1
    %s35 = scalar_select %p32, %s33, %s34
    %p38 = pneg %p32
    %p39 = scmp.eq.s32.totalorder %s11, 1
    %p40 = por %p38, %p39
    %p41 = scmp.ne.s32.totalorder %s33, %s36
    %p42 = scmp.eq.s32.totalorder %s11, 0
    %p43 = por %p41, %p42
    %p44 = scmp.ne.s32.totalorder %s33, %s36
    %p45 = scmp.eq.s32.totalorder %s16, 1
    %p46 = por %p44, %p45
    %p47 = scmp.ne.s32.totalorder %s36, %s37
    %p48 = scmp.eq.s32.totalorder %s16, 0
    %p49 = por %p47, %p48
    %p50 = scmp.ne.s32.totalorder %s36, %s37
    %p51 = scmp.eq.s32.totalorder %s17, 1
    %p52 = por %p50, %p51
    %p54 = scmp.ne.s32.totalorder %s37, %s53
    %p55 = scmp.eq.s32.totalorder %s17, 0
    %p56 = por %p54, %p55
    %s57 = ssub.s32 %s19, %s26
    %p58 = scmp.eq.s32.totalorder %s57, 0
    %s60 = sadd.s32 %s59, 1
    %s61 = scalar_select %p58, %s59, %s60
    %p64 = pneg %p58
    %p65 = scmp.eq.s32.totalorder %s11, 1
    %p66 = por %p64, %p65
    %p67 = scmp.ne.s32.totalorder %s59, %s62
    %p68 = scmp.eq.s32.totalorder %s11, 0
    %p69 = por %p67, %p68
    %p70 = scmp.ne.s32.totalorder %s59, %s62
    %p71 = scmp.eq.s32.totalorder %s16, 1
    %p72 = por %p70, %p71
    %p73 = scmp.ne.s32.totalorder %s62, %s63
    %p74 = scmp.eq.s32.totalorder %s16, 0
    %p75 = por %p73, %p74
    %p76 = scmp.ne.s32.totalorder %s62, %s63
    %p77 = scmp.eq.s32.totalorder %s17, 1
    %p78 = por %p76, %p77
    %p80 = scmp.ne.s32.totalorder %s63, %s79
    %p81 = scmp.eq.s32.totalorder %s17, 0
    %p82 = por %p80, %p81
    %s83 = ssub.s32 %s19, %s26
    %p84 = scmp.eq.s32.totalorder %s83, 0
    %s86 = sadd.s32 %s85, 1
    %s87 = scalar_select %p84, %s85, %s86
    %p90 = pneg %p84
    %p91 = scmp.eq.s32.totalorder %s11, 1
    %p92 = por %p90, %p91
    %p93 = scmp.ne.s32.totalorder %s85, %s88
    %p94 = scmp.eq.s32.totalorder %s11, 0
    %p95 = por %p93, %p94
    %p96 = scmp.ne.s32.totalorder %s85, %s88
    %p97 = scmp.eq.s32.totalorder %s16, 1
    %p98 = por %p96, %p97
    %p99 = scmp.ne.s32.totalorder %s88, %s89
    %p100 = scmp.eq.s32.totalorder %s16, 0
    %p101 = por %p99, %p100
    %p102 = scmp.ne.s32.totalorder %s88, %s89
    %p103 = scmp.eq.s32.totalorder %s17, 1
    %p104 = por %p102, %p103
    %p106 = scmp.ne.s32.totalorder %s89, %s105
    %p107 = scmp.eq.s32.totalorder %s17, 0
    %p108 = por %p106, %p107
    %s109 = ssub.s32 %s19, %s26
    %p110 = scmp.eq.s32.totalorder %s109, 0
    %s112 = sadd.s32 %s111, 1
    %s113 = scalar_select %p110, %s111, %s112
    %p116 = pneg %p110
    %p117 = scmp.eq.s32.totalorder %s11, 1
    %p118 = por %p116, %p117
    %p119 = scmp.ne.s32.totalorder %s111, %s114
    %p120 = scmp.eq.s32.totalorder %s11, 0
    %p121 = por %p119, %p120
    %p122 = scmp.ne.s32.totalorder %s111, %s114
    %p123 = scmp.eq.s32.totalorder %s16, 1
    %p124 = por %p122, %p123
    %p125 = scmp.ne.s32.totalorder %s114, %s115
    %p126 = scmp.eq.s32.totalorder %s16, 0
    %p127 = por %p125, %p126
    %p128 = scmp.ne.s32.totalorder %s114, %s115
    %p129 = scmp.eq.s32.totalorder %s17, 1
    %p130 = por %p128, %p129
    %p132 = scmp.ne.s32.totalorder %s115, %s131
    %p133 = scmp.eq.s32.totalorder %s17, 0
    %p134 = por %p132, %p133
    %s135 = ssub.s32 %s19, %s26
    %p136 = scmp.eq.s32.totalorder %s135, 0
    %s138 = sadd.s32 %s137, 1
    %s139 = scalar_select %p136, %s137, %s138
    %p142 = pneg %p136
    %p143 = scmp.eq.s32.totalorder %s11, 1
    %p144 = por %p142, %p143
    %p145 = scmp.ne.s32.totalorder %s137, %s140
    %p146 = scmp.eq.s32.totalorder %s11, 0
    %p147 = por %p145, %p146
    %p148 = scmp.ne.s32.totalorder %s137, %s140
    %p149 = scmp.eq.s32.totalorder %s16, 1
    %p150 = por %p148, %p149
    %p151 = scmp.ne.s32.totalorder %s140, %s141
    %p152 = scmp.eq.s32.totalorder %s16, 0
    %p153 = por %p151, %p152
    %p154 = scmp.ne.s32.totalorder %s140, %s141
    %p155 = scmp.eq.s32.totalorder %s17, 1
    %p156 = por %p154, %p155
    %p158 = scmp.ne.s32.totalorder %s141, %s157
    %p159 = scmp.eq.s32.totalorder %s17, 0
    %p160 = por %p158, %p159
    %s161 = ssub.s32 %s18, %s30
    %s162 = ssub.s32 %s19, %s26
    %s163 = sor.u32 %s161, %s162
    %p164 = scmp.eq.s32.totalorder %s163, 0
    %s166 = sadd.s32 %s165, 1
    %s167 = scalar_select %p164, %s165, %s166
    %p170 = pneg %p164
    %p171 = scmp.eq.s32.totalorder %s11, 1
    %p172 = por %p170, %p171
    %p173 = scmp.ne.s32.totalorder %s165, %s168
    %p174 = scmp.eq.s32.totalorder %s11, 0
    %p175 = por %p173, %p174
    %p176 = scmp.ne.s32.totalorder %s165, %s168
    %p177 = scmp.eq.s32.totalorder %s16, 1
    %p178 = por %p176, %p177
    %p179 = scmp.ne.s32.totalorder %s168, %s169
    %p180 = scmp.eq.s32.totalorder %s16, 0
    %p181 = por %p179, %p180
    %p182 = scmp.ne.s32.totalorder %s168, %s169
    %p183 = scmp.eq.s32.totalorder %s17, 1
    %p184 = por %p182, %p183
    %p186 = scmp.ne.s32.totalorder %s169, %s185
    %p187 = scmp.eq.s32.totalorder %s17, 0
    %p188 = por %p186, %p187
    %p189 = scmp.le.s32.totalorder 1, %s11
    %p190 = scmp.lt.s32.totalorder %s11, 3
    %p191 = pnand %p189, %p190
    %p192 = pneg %p191
    // Predicated region
    $region9: #{circ_conv_nchw.1} parent=5 // pred_check
      _
    $region10: #{circ_conv_nchw.1} parent=5 // pred_check_branch
      %194 = sbr.rel (%p191) target = $region12
    $region11: #{circ_conv_nchw.1} parent=5 // pred_region
      %s195 = ssub.s32 %s11, 1
      // Predicated region
      $region13: #{circ_conv_nchw.1} parent=11 // pred_check
        %p196 = pneg %p75
      $region14: #{circ_conv_nchw.1} parent=11 // pred_check_branch
        %198 = sbr.rel (%p196) target = $region16
      $region15: #{circ_conv_nchw.1} parent=11 // pred_region
        %p199 = scmp.lt.s32.totalorder %s21, 0
        %s200 = scalar_select %p199, %s21, 0
        %s201 = smul.addr %s200, 4
        %s202 = scalar_lea.vmem %s1, %s201
      $region16: #{circ_conv_nchw.1} parent=11 // pred_fallthru
        _
      // Predicated region
      $region17: #{circ_conv_nchw.1} parent=11 // pred_check
        %p203 = pneg %p101
      $region18: #{circ_conv_nchw.1} parent=11 // pred_check_branch
        %205 = sbr.rel (%p203) target = $region20
      $region19: #{circ_conv_nchw.1} parent=11 // pred_region
        %p206 = scmp.lt.s32.totalorder %s21, 0
        %s207 = scalar_select %p206, %s21, 0
        %s208 = scalar_lea.vmem %s2, %s207
      $region20: #{circ_conv_nchw.1} parent=11 // pred_fallthru
        _
      // Predicated region
      $region21: #{circ_conv_nchw.1} parent=11 // pred_check
        %p209 = pneg %p127
      $region22: #{circ_conv_nchw.1} parent=11 // pred_check_branch
        %211 = sbr.rel (%p209) target = $region24
      $region23: #{circ_conv_nchw.1} parent=11 // pred_region
        %p212 = scmp.lt.s32.totalorder %s21, 0
        %s213 = scalar_select %p212, %s21, 0
        %s214 = scalar_lea.vmem %s3, %s213
      $region24: #{circ_conv_nchw.1} parent=11 // pred_fallthru
        _
      // Predicated region
      $region25: #{circ_conv_nchw.1} parent=11 // pred_check
        %p215 = pneg %p153
      $region26: #{circ_conv_nchw.1} parent=11 // pred_check_branch
        %217 = sbr.rel (%p215) target = $region28
      $region27: #{circ_conv_nchw.1} parent=11 // pred_region
        %p218 = scmp.lt.s32.totalorder %s21, 0
        %s219 = scalar_select %p218, %s21, 0
        %s220 = scalar_lea.vmem %s4, %s219
      $region28: #{circ_conv_nchw.1} parent=11 // pred_fallthru
        _
    $region12: #{circ_conv_nchw.1} parent=5 // pred_fallthru
      _
    %p221 = scmp.lt.s32.totalorder %s11, 2
    // Predicated region
    $region29: #{circ_conv_nchw.1} parent=5 // pred_check
      %p222 = pneg %p221
    $region30: #{circ_conv_nchw.1} parent=5 // pred_check_branch
      %224 = sbr.rel (%p222) target = $region32
    $region31: #{circ_conv_nchw.1} parent=5 // pred_region
      // Predicated region
      $region33: #{circ_conv_nchw.1} parent=31 // pred_check
        %p225 = pneg %p43
      $region34: #{circ_conv_nchw.1} parent=31 // pred_check_branch
        %227 = sbr.rel (%p225) target = $region36
      $region35: #{circ_conv_nchw.1} parent=31 // pred_region
        %s228 = smul.u32 32, %s18
        %p229 = scmp.lt.s32.totalorder %s228, 63
        %s230 = scalar_select %p229, %s228, 63
        %s231 = smul.addr %s230, 4
        %s232 = scalar_lea.vmem %s0, %s231
        %s233 = smul.u32 32, %s18
      $region36: #{circ_conv_nchw.1} parent=31 // pred_fallthru
        _
    $region32: #{circ_conv_nchw.1} parent=5 // pred_fallthru
      _
    %p234 = scmp.le.s32.totalorder 1, %s11
    %p235 = scmp.lt.s32.totalorder %s11, 3
    %p236 = pnand %p234, %p235
    %p237 = pneg %p236
    // Predicated region
    $region37: #{circ_conv_nchw.1} parent=5 // pred_check
      _
    $region38: #{circ_conv_nchw.1} parent=5 // pred_check_branch
      %239 = sbr.rel (%p236) target = $region40
    $region39: #{circ_conv_nchw.1} parent=5 // pred_region
      %s240 = ssub.s32 %s11, 1
      %s241 = smul.u32 32, %s20
      %p242 = scmp.lt.s32.totalorder %s241, 63
      %s243 = scalar_select %p242, %s241, 63
      %s244 = smul.addr %s243, 4
      %s245 = scalar_lea.vmem %s0, %s244
      %p246 = pneg %p49
      %p247 = pneg %p46
      %p248 = scmp.lt.s32.totalorder %s21, 0
      %s249 = scalar_select %p248, %s21, 0
      %s250 = smul.addr %s249, 4
      %s251 = scalar_lea.vmem %s1, %s250
      %p252 = pneg %p75
      %p253 = pneg %p72
      %p254 = scmp.lt.s32.totalorder %s21, 0
      %s255 = scalar_select %p254, %s21, 0
      %s256 = scalar_lea.vmem %s2, %s255
      %p257 = pneg %p101
      %p258 = pneg %p98
      %p259 = scmp.lt.s32.totalorder %s21, 0
      %s260 = scalar_select %p259, %s21, 0
      %s261 = scalar_lea.vmem %s3, %s260
      %p262 = pneg %p127
      %p263 = pneg %p124
      %p264 = scmp.lt.s32.totalorder %s21, 0
      %s265 = scalar_select %p264, %s21, 0
      %s266 = scalar_lea.vmem %s4, %s265
      %p267 = pneg %p153
      %p268 = pneg %p150
      %p269 = pneg %p181
      %p270 = pneg %p178
      %s271 = smul.u32 32, %s20
      %p272 = scmp.lt.s32.totalorder %s271, 63
      %s273 = scalar_select %p272, %s271, 63
      %p274 = scmp.lt.s32.totalorder %s21, 0
      %s275 = scalar_select %p274, %s21, 0
      %s276 = sadd.s32 %s275, %s273
      %s277 = smul.addr %s276, 8
      %s278 = scalar_lea.vmem %s5, %s277
      %s279 = smul.u32 32, %s20
      %p280 = scmp.lt.s32.totalorder %s279, 63
      %s281 = scalar_select %p280, %s279, 63
      %s282 = smul.addr %s281, 4
      %s283 = scalar_lea.vmem %s0, %s282
      %s284 = smul.u32 32, %s20
      %p285 = scmp.lt.s32.totalorder %s21, 0
      %s286 = scalar_select %p285, %s21, 0
      %s287 = smul.addr %s286, 4
      %s288 = scalar_lea.vmem %s1, %s287
      %p289 = scmp.lt.s32.totalorder %s21, 0
      %s290 = scalar_select %p289, %s21, 0
      %s291 = scalar_lea.vmem %s2, %s290
      %p292 = scmp.lt.s32.totalorder %s21, 0
      %s293 = scalar_select %p292, %s21, 0
      %s294 = scalar_lea.vmem %s3, %s293
      %p295 = scmp.lt.s32.totalorder %s21, 0
      %s296 = scalar_select %p295, %s21, 0
      %s297 = scalar_lea.vmem %s4, %s296
      %s298 = smul.u32 32, %s20
      %p299 = scmp.lt.s32.totalorder %s298, 63
      %s300 = scalar_select %p299, %s298, 63
      %p301 = scmp.lt.s32.totalorder %s21, 0
      %s302 = scalar_select %p301, %s21, 0
      %s303 = sadd.s32 %s302, %s300
      %s304 = smul.addr %s303, 8
      %s305 = scalar_lea.vmem %s5, %s304
      %s306 = smul.u32 32, %s20
      %v307 = vld [vmem:[%s283] sm:$0xf]
      %v308 = vld [vmem:[%s283 + $0x4] sm:$0xf]
      %v309 = vld [vmem:[%s283 + $0x8] sm:$0xf]
      %v310 = vld [vmem:[%s283 + $0xc] sm:$0xf]
      %v311 = vld [vmem:[%s283 + $0x10] sm:$0xf]
      %v312 = vld [vmem:[%s283 + $0x14] sm:$0xf]
      %v313 = vld [vmem:[%s283 + $0x18] sm:$0xf]
      %v314 = vld [vmem:[%s283 + $0x1c] sm:$0xf]
      %v315 = vld [vmem:[%s283 + $0x20] sm:$0xf]
      %v316 = vld [vmem:[%s283 + $0x24] sm:$0xf]
      %v317 = vld [vmem:[%s283 + $0x28] sm:$0xf]
      %v318 = vld [vmem:[%s283 + $0x2c] sm:$0xf]
      %v319 = vld [vmem:[%s283 + $0x30] sm:$0xf]
      %v320 = vld [vmem:[%s283 + $0x34] sm:$0xf]
      %v321 = vld [vmem:[%s283 + $0x38] sm:$0xf]
      %v322 = vld [vmem:[%s283 + $0x3c] sm:$0xf]
      %v323 = vld [vmem:[%s283 + $0x40] sm:$0xf]
      %v324 = vld [vmem:[%s283 + $0x44] sm:$0xf]
      %v325 = vld [vmem:[%s283 + $0x48] sm:$0xf]
      %v326 = vld [vmem:[%s283 + $0x4c] sm:$0xf]
      %v327 = vld [vmem:[%s283 + $0x50] sm:$0xf]
      %v328 = vld [vmem:[%s283 + $0x54] sm:$0xf]
      %v329 = vld [vmem:[%s283 + $0x58] sm:$0xf]
      %v330 = vld [vmem:[%s283 + $0x5c] sm:$0xf]
      %v331 = vld [vmem:[%s283 + $0x60] sm:$0xf]
      %v332 = vld [vmem:[%s283 + $0x64] sm:$0xf]
      %v333 = vld [vmem:[%s283 + $0x68] sm:$0xf]
      %v334 = vld [vmem:[%s283 + $0x6c] sm:$0xf]
      %v335 = vld [vmem:[%s283 + $0x70] sm:$0xf]
      %v336 = vld [vmem:[%s283 + $0x74] sm:$0xf]
      %v337 = vld [vmem:[%s283 + $0x78] sm:$0xf]
      %v338 = vld [vmem:[%s283 + $0x7c] sm:$0xf]
      %v339 = vld [vmem:[%s288] sm:$0xf]
      %v340 = vld [vmem:[%s288 + $0x4] sm:$0xf]
      %v341 = vld [vmem:[%s288 + $0x8] sm:$0xf]
      %v342 = vld [vmem:[%s288 + $0xc] sm:$0xf]
      %v343 = vld [vmem:[%s288 + $0x10] sm:$0xf]
      %v344 = vld [vmem:[%s288 + $0x14] sm:$0xf]
      %v345 = vld [vmem:[%s288 + $0x18] sm:$0xf]
      %v346 = vld [vmem:[%s288 + $0x1c] sm:$0xf]
      %v347 = vld [vmem:[%s288 + $0x20] sm:$0xf]
      %v348 = vld [vmem:[%s288 + $0x24] sm:$0xf]
      %v349 = vld [vmem:[%s288 + $0x28] sm:$0xf]
      %v350 = vld [vmem:[%s288 + $0x2c] sm:$0xf]
      %v351 = vld [vmem:[%s288 + $0x30] sm:$0xf]
      %v352 = vld [vmem:[%s288 + $0x34] sm:$0xf]
      %v353 = vld [vmem:[%s288 + $0x38] sm:$0xf]
      %v354 = vld [vmem:[%s288 + $0x3c] sm:$0xf]
      %v387 = vunpack.c.l.b16 %v307
      %v388 = vunpack.c.l.b16 %v308
      %v389 = vunpack.c.l.b16 %v309
      %v390 = vunpack.c.l.b16 %v310
      %v391 = vunpack.c.l.b16 %v311
      %v392 = vunpack.c.l.b16 %v312
      %v393 = vunpack.c.l.b16 %v313
      %v394 = vunpack.c.l.b16 %v314
      %v395 = vunpack.c.l.b16 %v315
      %v396 = vunpack.c.l.b16 %v316
      %v397 = vunpack.c.l.b16 %v317
      %v398 = vunpack.c.l.b16 %v318
      %v399 = vunpack.c.l.b16 %v319
      %v400 = vunpack.c.l.b16 %v320
      %v401 = vunpack.c.l.b16 %v321
      %v402 = vunpack.c.l.b16 %v322
      %v403 = vunpack.c.l.b16 %v323
      %v404 = vunpack.c.l.b16 %v324
      %v405 = vunpack.c.l.b16 %v325
      %v406 = vunpack.c.l.b16 %v326
      %v407 = vunpack.c.l.b16 %v327
      %v408 = vunpack.c.l.b16 %v328
      %v409 = vunpack.c.l.b16 %v329
      %v410 = vunpack.c.l.b16 %v330
      %v411 = vunpack.c.l.b16 %v331
      %v412 = vunpack.c.l.b16 %v332
      %v413 = vunpack.c.l.b16 %v333
      %v414 = vunpack.c.l.b16 %v334
      %v415 = vunpack.c.l.b16 %v335
      %v416 = vunpack.c.l.b16 %v336
      %v417 = vunpack.c.l.b16 %v337
      %v418 = vunpack.c.l.b16 %v338
      %v419 = vpack.c.b16 %v388, %v387
      %v420 = vpack.c.b16 %v390, %v389
      %v421 = vpack.c.b16 %v392, %v391
      %v422 = vpack.c.b16 %v394, %v393
      %v423 = vpack.c.b16 %v396, %v395
      %v424 = vpack.c.b16 %v398, %v397
      %v425 = vpack.c.b16 %v400, %v399
      %v426 = vpack.c.b16 %v402, %v401
      %v427 = vpack.c.b16 %v404, %v403
      %v428 = vpack.c.b16 %v406, %v405
      %v429 = vpack.c.b16 %v408, %v407
      %v430 = vpack.c.b16 %v410, %v409
      %v431 = vpack.c.b16 %v412, %v411
      %v432 = vpack.c.b16 %v414, %v413
      %v433 = vpack.c.b16 %v416, %v415
      %v434 = vpack.c.b16 %v418, %v417
      %v467 = vunpack.c.l.b16 %v339
      %v468 = vunpack.c.l.b16 %v340
      %v469 = vunpack.c.l.b16 %v341
      %v470 = vunpack.c.l.b16 %v342
      %v471 = vunpack.c.l.b16 %v343
      %v472 = vunpack.c.l.b16 %v344
      %v473 = vunpack.c.l.b16 %v345
      %v474 = vunpack.c.l.b16 %v346
      %v475 = vunpack.c.l.b16 %v347
      %v476 = vunpack.c.l.b16 %v348
      %v477 = vunpack.c.l.b16 %v349
      %v478 = vunpack.c.l.b16 %v350
      %v479 = vunpack.c.l.b16 %v351
      %v480 = vunpack.c.l.b16 %v352
      %v481 = vunpack.c.l.b16 %v353
      %v482 = vunpack.c.l.b16 %v354
      %v483 = vpack.c.b16 %v468, %v467
      %v484 = vpack.c.b16 %v470, %v469
      %v485 = vpack.c.b16 %v472, %v471
      %v486 = vpack.c.b16 %v474, %v473
      %v487 = vpack.c.b16 %v476, %v475
      %v488 = vpack.c.b16 %v478, %v477
      %v489 = vpack.c.b16 %v480, %v479
      %v490 = vpack.c.b16 %v482, %v481
      %499 = vmatpush.bf16.msra.mxu0 %v490
      %500 = vmatpush.bf16.msra.mxu0 %v489
      %501 = vmatpush.bf16.msra.mxu0 %v488
      %502 = vmatpush.bf16.msra.mxu0 %v487
      %503 = vmatpush.bf16.msra.mxu0 %v486
      %504 = vmatpush.bf16.msra.mxu0 %v485
      %505 = vmatpush.bf16.msra.mxu0 %v484
      %506 = vmatpush.bf16.msra.mxu0 %v483
      %507 = vmatmul.bf16.gmra.mxu0 %v419
      %v508 = vpop.f32.mrf.mxu0
      %v509 = vadd.f32 0.0, %v508
      %v510 = vpop.f32.mrf.mxu0
      %v511 = vadd.f32 0.0, %v510
      %512 = vmatmul.bf16.gmra.mxu0 %v420
      %v513 = vpop.f32.mrf.mxu0
      %v514 = vadd.f32 0.0, %v513
      %v515 = vpop.f32.mrf.mxu0
      %v516 = vadd.f32 0.0, %v515
      %517 = vmatmul.bf16.gmra.mxu0 %v421
      %v518 = vpop.f32.mrf.mxu0
      %v519 = vadd.f32 0.0, %v518
      %v520 = vpop.f32.mrf.mxu0
      %v521 = vadd.f32 0.0, %v520
      %522 = vmatmul.bf16.gmra.mxu0 %v422
      %v523 = vpop.f32.mrf.mxu0
      %v524 = vadd.f32 0.0, %v523
      %v525 = vpop.f32.mrf.mxu0
      %v526 = vadd.f32 0.0, %v525
      %527 = vmatmul.bf16.gmra.mxu0 %v423
      %v528 = vpop.f32.mrf.mxu0
      %v529 = vadd.f32 0.0, %v528
      %v530 = vpop.f32.mrf.mxu0
      %v531 = vadd.f32 0.0, %v530
      %532 = vmatmul.bf16.gmra.mxu0 %v424
      %v533 = vpop.f32.mrf.mxu0
      %v534 = vadd.f32 0.0, %v533
      %v535 = vpop.f32.mrf.mxu0
      %v536 = vadd.f32 0.0, %v535
      %537 = vmatmul.bf16.gmra.mxu0 %v425
      %v538 = vpop.f32.mrf.mxu0
      %v539 = vadd.f32 0.0, %v538
      %v540 = vpop.f32.mrf.mxu0
      %v541 = vadd.f32 0.0, %v540
      %542 = vmatmul.bf16.gmra.mxu0 %v426
      %v543 = vpop.f32.mrf.mxu0
      %v544 = vadd.f32 0.0, %v543
      %v545 = vpop.f32.mrf.mxu0
      %v546 = vadd.f32 0.0, %v545
      %547 = vmatmul.bf16.gmra.mxu0 %v427
      %v548 = vpop.f32.mrf.mxu0
      %v549 = vadd.f32 0.0, %v548
      %v550 = vpop.f32.mrf.mxu0
      %v551 = vadd.f32 0.0, %v550
      %552 = vmatmul.bf16.gmra.mxu0 %v428
      %v553 = vpop.f32.mrf.mxu0
      %v554 = vadd.f32 0.0, %v553
      %v555 = vpop.f32.mrf.mxu0
      %v556 = vadd.f32 0.0, %v555
      %557 = vmatmul.bf16.gmra.mxu0 %v429
      %v558 = vpop.f32.mrf.mxu0
      %v559 = vadd.f32 0.0, %v558
      %v560 = vpop.f32.mrf.mxu0
      %v561 = vadd.f32 0.0, %v560
      %562 = vmatmul.bf16.gmra.mxu0 %v430
      %v563 = vpop.f32.mrf.mxu0
      %v564 = vadd.f32 0.0, %v563
      %v565 = vpop.f32.mrf.mxu0
      %v566 = vadd.f32 0.0, %v565
      %567 = vmatmul.bf16.gmra.mxu0 %v431
      %v568 = vpop.f32.mrf.mxu0
      %v569 = vadd.f32 0.0, %v568
      %v570 = vpop.f32.mrf.mxu0
      %v571 = vadd.f32 0.0, %v570
      %572 = vmatmul.bf16.gmra.mxu0 %v432
      %v573 = vpop.f32.mrf.mxu0
      %v574 = vadd.f32 0.0, %v573
      %v575 = vpop.f32.mrf.mxu0
      %v576 = vadd.f32 0.0, %v575
      %577 = vmatmul.bf16.gmra.mxu0 %v433
      %v578 = vpop.f32.mrf.mxu0
      %v579 = vadd.f32 0.0, %v578
      %v580 = vpop.f32.mrf.mxu0
      %v581 = vadd.f32 0.0, %v580
      %582 = vmatmul.bf16.gmra.mxu0 %v434
      %v583 = vpop.f32.mrf.mxu0
      %v584 = vadd.f32 0.0, %v583
      %v585 = vpop.f32.mrf.mxu0
      %v586 = vadd.f32 0.0, %v585
      %587 = vdwg.mxu0
      %v588 = vld [vmem:[%s291] sm:$0x1]
      %v590 = vperm.slane %v588, 0
      %v592 = vmul.f32 %v509, %v590
      %v593 = vmul.f32 %v511, %v590
      %v594 = vmul.f32 %v514, %v590
      %v595 = vmul.f32 %v516, %v590
      %v596 = vmul.f32 %v519, %v590
      %v597 = vmul.f32 %v521, %v590
      %v598 = vmul.f32 %v524, %v590
      %v599 = vmul.f32 %v526, %v590
      %v600 = vmul.f32 %v529, %v590
      %v601 = vmul.f32 %v531, %v590
      %v602 = vmul.f32 %v534, %v590
      %v603 = vmul.f32 %v536, %v590
      %v604 = vmul.f32 %v539, %v590
      %v605 = vmul.f32 %v541, %v590
      %v606 = vmul.f32 %v544, %v590
      %v607 = vmul.f32 %v546, %v590
      %v608 = vmul.f32 %v549, %v590
      %v609 = vmul.f32 %v551, %v590
      %v610 = vmul.f32 %v554, %v590
      %v611 = vmul.f32 %v556, %v590
      %v612 = vmul.f32 %v559, %v590
      %v613 = vmul.f32 %v561, %v590
      %v614 = vmul.f32 %v564, %v590
      %v615 = vmul.f32 %v566, %v590
      %v616 = vmul.f32 %v569, %v590
      %v617 = vmul.f32 %v571, %v590
      %v618 = vmul.f32 %v574, %v590
      %v619 = vmul.f32 %v576, %v590
      %v620 = vmul.f32 %v579, %v590
      %v621 = vmul.f32 %v581, %v590
      %v622 = vmul.f32 %v584, %v590
      %v623 = vmul.f32 %v586, %v590
      %v624 = vld [vmem:[%s294] sm:$0x1]
      %v626 = vperm.slane %v624, 0
      %v628 = vadd.f32 %v592, %v626
      %v629 = vadd.f32 %v593, %v626
      %v630 = vadd.f32 %v594, %v626
      %v631 = vadd.f32 %v595, %v626
      %v632 = vadd.f32 %v596, %v626
      %v633 = vadd.f32 %v597, %v626
      %v634 = vadd.f32 %v598, %v626
      %v635 = vadd.f32 %v599, %v626
      %v636 = vadd.f32 %v600, %v626
      %v637 = vadd.f32 %v601, %v626
      %v638 = vadd.f32 %v602, %v626
      %v639 = vadd.f32 %v603, %v626
      %v640 = vadd.f32 %v604, %v626
      %v641 = vadd.f32 %v605, %v626
      %v642 = vadd.f32 %v606, %v626
      %v643 = vadd.f32 %v607, %v626
      %v644 = vadd.f32 %v608, %v626
      %v645 = vadd.f32 %v609, %v626
      %v646 = vadd.f32 %v610, %v626
      %v647 = vadd.f32 %v611, %v626
      %v648 = vadd.f32 %v612, %v626
      %v649 = vadd.f32 %v613, %v626
      %v650 = vadd.f32 %v614, %v626
      %v651 = vadd.f32 %v615, %v626
      %v652 = vadd.f32 %v616, %v626
      %v653 = vadd.f32 %v617, %v626
      %v654 = vadd.f32 %v618, %v626
      %v655 = vadd.f32 %v619, %v626
      %v656 = vadd.f32 %v620, %v626
      %v657 = vadd.f32 %v621, %v626
      %v658 = vadd.f32 %v622, %v626
      %v659 = vadd.f32 %v623, %v626
      %vm660 = vcmp.gt.f32.partialorder %v628, 0.0
      %vm661 = vcmp.gt.f32.partialorder %v629, 0.0
      %vm662 = vcmp.gt.f32.partialorder %v630, 0.0
      %vm663 = vcmp.gt.f32.partialorder %v631, 0.0
      %vm664 = vcmp.gt.f32.partialorder %v632, 0.0
      %vm665 = vcmp.gt.f32.partialorder %v633, 0.0
      %vm666 = vcmp.gt.f32.partialorder %v634, 0.0
      %vm667 = vcmp.gt.f32.partialorder %v635, 0.0
      %vm668 = vcmp.gt.f32.partialorder %v636, 0.0
      %vm669 = vcmp.gt.f32.partialorder %v637, 0.0
      %vm670 = vcmp.gt.f32.partialorder %v638, 0.0
      %vm671 = vcmp.gt.f32.partialorder %v639, 0.0
      %vm672 = vcmp.gt.f32.partialorder %v640, 0.0
      %vm673 = vcmp.gt.f32.partialorder %v641, 0.0
      %vm674 = vcmp.gt.f32.partialorder %v642, 0.0
      %vm675 = vcmp.gt.f32.partialorder %v643, 0.0
      %vm676 = vcmp.gt.f32.partialorder %v644, 0.0
      %vm677 = vcmp.gt.f32.partialorder %v645, 0.0
      %vm678 = vcmp.gt.f32.partialorder %v646, 0.0
      %vm679 = vcmp.gt.f32.partialorder %v647, 0.0
      %vm680 = vcmp.gt.f32.partialorder %v648, 0.0
      %vm681 = vcmp.gt.f32.partialorder %v649, 0.0
      %vm682 = vcmp.gt.f32.partialorder %v650, 0.0
      %vm683 = vcmp.gt.f32.partialorder %v651, 0.0
      %vm684 = vcmp.gt.f32.partialorder %v652, 0.0
      %vm685 = vcmp.gt.f32.partialorder %v653, 0.0
      %vm686 = vcmp.gt.f32.partialorder %v654, 0.0
      %vm687 = vcmp.gt.f32.partialorder %v655, 0.0
      %vm688 = vcmp.gt.f32.partialorder %v656, 0.0
      %vm689 = vcmp.gt.f32.partialorder %v657, 0.0
      %vm690 = vcmp.gt.f32.partialorder %v658, 0.0
      %vm691 = vcmp.gt.f32.partialorder %v659, 0.0
      %v692 = vld [vmem:[%s297] sm:$0x1]
      %v694 = vperm.slane %v692, 0
      %v696 = vmul.f32 %v694, %v628
      %v697 = vmul.f32 %v694, %v629
      %v698 = vmul.f32 %v694, %v630
      %v699 = vmul.f32 %v694, %v631
      %v700 = vmul.f32 %v694, %v632
      %v701 = vmul.f32 %v694, %v633
      %v702 = vmul.f32 %v694, %v634
      %v703 = vmul.f32 %v694, %v635
      %v704 = vmul.f32 %v694, %v636
      %v705 = vmul.f32 %v694, %v637
      %v706 = vmul.f32 %v694, %v638
      %v707 = vmul.f32 %v694, %v639
      %v708 = vmul.f32 %v694, %v640
      %v709 = vmul.f32 %v694, %v641
      %v710 = vmul.f32 %v694, %v642
      %v711 = vmul.f32 %v694, %v643
      %v712 = vmul.f32 %v694, %v644
      %v713 = vmul.f32 %v694, %v645
      %v714 = vmul.f32 %v694, %v646
      %v715 = vmul.f32 %v694, %v647
      %v716 = vmul.f32 %v694, %v648
      %v717 = vmul.f32 %v694, %v649
      %v718 = vmul.f32 %v694, %v650
      %v719 = vmul.f32 %v694, %v651
      %v720 = vmul.f32 %v694, %v652
      %v721 = vmul.f32 %v694, %v653
      %v722 = vmul.f32 %v694, %v654
      %v723 = vmul.f32 %v694, %v655
      %v724 = vmul.f32 %v694, %v656
      %v725 = vmul.f32 %v694, %v657
      %v726 = vmul.f32 %v694, %v658
      %v727 = vmul.f32 %v694, %v659
      %v728 = vsel %vm660, %v628, %v696
      %v729 = vsel %vm661, %v629, %v697
      %v730 = vsel %vm662, %v630, %v698
      %v731 = vsel %vm663, %v631, %v699
      %v732 = vsel %vm664, %v632, %v700
      %v733 = vsel %vm665, %v633, %v701
      %v734 = vsel %vm666, %v634, %v702
      %v735 = vsel %vm667, %v635, %v703
      %v736 = vsel %vm668, %v636, %v704
      %v737 = vsel %vm669, %v637, %v705
      %v738 = vsel %vm670, %v638, %v706
      %v739 = vsel %vm671, %v639, %v707
      %v740 = vsel %vm672, %v640, %v708
      %v741 = vsel %vm673, %v641, %v709
      %v742 = vsel %vm674, %v642, %v710
      %v743 = vsel %vm675, %v643, %v711
      %v744 = vsel %vm676, %v644, %v712
      %v745 = vsel %vm677, %v645, %v713
      %v746 = vsel %vm678, %v646, %v714
      %v747 = vsel %vm679, %v647, %v715
      %v748 = vsel %vm680, %v648, %v716
      %v749 = vsel %vm681, %v649, %v717
      %v750 = vsel %vm682, %v650, %v718
      %v751 = vsel %vm683, %v651, %v719
      %v752 = vsel %vm684, %v652, %v720
      %v753 = vsel %vm685, %v653, %v721
      %v754 = vsel %vm686, %v654, %v722
      %v755 = vsel %vm687, %v655, %v723
      %v756 = vsel %vm688, %v656, %v724
      %v757 = vsel %vm689, %v657, %v725
      %v758 = vsel %vm690, %v658, %v726
      %v759 = vsel %vm691, %v659, %v727
      %760 = vst [vmem:[%s305] sm:$0xff] %v728
      %761 = vst [vmem:[%s305 + $0x8] sm:$0xff] %v729
      %762 = vst [vmem:[%s305 + $0x10] sm:$0xff] %v730
      %763 = vst [vmem:[%s305 + $0x18] sm:$0xff] %v731
      %764 = vst [vmem:[%s305 + $0x20] sm:$0xff] %v732
      %765 = vst [vmem:[%s305 + $0x28] sm:$0xff] %v733
      %766 = vst [vmem:[%s305 + $0x30] sm:$0xff] %v734
      %767 = vst [vmem:[%s305 + $0x38] sm:$0xff] %v735
      %768 = vst [vmem:[%s305 + $0x40] sm:$0xff] %v736
      %769 = vst [vmem:[%s305 + $0x48] sm:$0xff] %v737
      %770 = vst [vmem:[%s305 + $0x50] sm:$0xff] %v738
      %771 = vst [vmem:[%s305 + $0x58] sm:$0xff] %v739
      %772 = vst [vmem:[%s305 + $0x60] sm:$0xff] %v740
      %773 = vst [vmem:[%s305 + $0x68] sm:$0xff] %v741
      %774 = vst [vmem:[%s305 + $0x70] sm:$0xff] %v742
      %775 = vst [vmem:[%s305 + $0x78] sm:$0xff] %v743
      %776 = vst [vmem:[%s305 + $0x80] sm:$0xff] %v744
      %777 = vst [vmem:[%s305 + $0x88] sm:$0xff] %v745
      %778 = vst [vmem:[%s305 + $0x90] sm:$0xff] %v746
      %779 = vst [vmem:[%s305 + $0x98] sm:$0xff] %v747
      %780 = vst [vmem:[%s305 + $0xa0] sm:$0xff] %v748
      %781 = vst [vmem:[%s305 + $0xa8] sm:$0xff] %v749
      %782 = vst [vmem:[%s305 + $0xb0] sm:$0xff] %v750
      %783 = vst [vmem:[%s305 + $0xb8] sm:$0xff] %v751
      %784 = vst [vmem:[%s305 + $0xc0] sm:$0xff] %v752
      %785 = vst [vmem:[%s305 + $0xc8] sm:$0xff] %v753
      %786 = vst [vmem:[%s305 + $0xd0] sm:$0xff] %v754
      %787 = vst [vmem:[%s305 + $0xd8] sm:$0xff] %v755
      %788 = vst [vmem:[%s305 + $0xe0] sm:$0xff] %v756
      %789 = vst [vmem:[%s305 + $0xe8] sm:$0xff] %v757
      %790 = vst [vmem:[%s305 + $0xf0] sm:$0xff] %v758
      %791 = vst [vmem:[%s305 + $0xf8] sm:$0xff] %v759
      %s792 = smul.u32 32, %s20
      %p793 = scmp.lt.s32.totalorder %s792, 63
      %s794 = scalar_select %p793, %s792, 63
      %p795 = scmp.lt.s32.totalorder %s21, 0
      %s796 = scalar_select %p795, %s21, 0
      %s797 = sadd.s32 %s796, %s794
      %s798 = smul.addr %s797, 8
      %s799 = scalar_lea.vmem %s5, %s798
      // Predicated region
      $region41: #{circ_conv_nchw.1} parent=39 // pred_check
        %p800 = pneg %p178
      $region42: #{circ_conv_nchw.1} parent=39 // pred_check_branch
        %802 = sbr.rel (%p800) target = $region44
      $region43: #{circ_conv_nchw.1} parent=39 // pred_region
        %s803 = smul.u32 32, %s20
      $region44: #{circ_conv_nchw.1} parent=39 // pred_fallthru
        _
    $region40: #{circ_conv_nchw.1} parent=5 // pred_fallthru
      _
    %p804 = scmp.le.s32.totalorder 2, %s11
    // Predicated region
    $region45: #{circ_conv_nchw.1} parent=5 // pred_check
      %p805 = pneg %p804
    $region46: #{circ_conv_nchw.1} parent=5 // pred_check_branch
      %807 = sbr.rel (%p805) target = $region48
    $region47: #{circ_conv_nchw.1} parent=5 // pred_region
      %s808 = ssub.s32 %s11, 2
      // Predicated region
      $region49: #{circ_conv_nchw.1} parent=47 // pred_check
        %p809 = pneg %p184
      $region50: #{circ_conv_nchw.1} parent=47 // pred_check_branch
        %811 = sbr.rel (%p809) target = $region52
      $region51: #{circ_conv_nchw.1} parent=47 // pred_region
        %s812 = smul.u32 32, %s22
        %p813 = scmp.lt.s32.totalorder %s812, 63
        %s814 = scalar_select %p813, %s812, 63
        %p815 = scmp.lt.s32.totalorder %s23, 0
        %s816 = scalar_select %p815, %s23, 0
        %s817 = sadd.s32 %s816, %s814
        %s818 = smul.addr %s817, 8
        %s819 = scalar_lea.vmem %s5, %s818
      $region52: #{circ_conv_nchw.1} parent=47 // pred_fallthru
        _
    $region48: #{circ_conv_nchw.1} parent=5 // pred_fallthru
      _
  $region6: #{circ_conv_nchw.1} parent=0 // loop_footer
    %s15 = sadd.s32 1, %s11
  $region7: #{circ_conv_nchw.1} parent=0 // loop_footer_branch
    %10 = sbr.rel target = $region3
  $region8: #{circ_conv_nchw.1} parent=0 // loop_exit
    _

</llo_original>
